<compile_context>
chip_gen: v6e
topology: v6e:2x2x1
jax: 0.10.0
libtpu: 0.0.40
codegen_flags: <defaults>
</compile_context>

<pallas_src>
import functools
import math

import jax
import jax.numpy as jnp
from jax import lax
from jax.experimental import pallas as pl
from jax.experimental.pallas import tpu as pltpu

# Finite "masked out" value; exp() underflows to exactly 0.  NOTE: fully-masked rows
# therefore yield a uniform alpha (1/T) instead of the reference's NaN row.
_NEG_FILL = -1e30


def _vmem_capacity_bytes() -> int:
    """VMEM capacity of the local TPU; conservative 64 MiB if the query fails."""
    try:
        return int(pltpu.get_tpu_info().vmem_capacity_bytes)
    except Exception:
        return 64 * 1024 * 1024


def _pick_tq(seq_len: int, requested, big_vmem: bool) -> int:
    """Query-tile size: large on 128 MiB VMEM parts, smaller on v7x's 64 MiB."""
    tq = requested if requested is not None else (512 if big_vmem else 256)
    tq = min(tq, seq_len)
    while seq_len % tq:
        tq //= 2
    if tq < 8:                       # keep the sublane dim of (tq, T) blocks 8-aligned
        tq = seq_len
    return tq


# ----------------------------------------------------------------------------------- #
# Kernel 1: fused QKV projection  (B*T, D) x (D, 3H)  ->  q, k, v  each (B*T, H)       #
# ----------------------------------------------------------------------------------- #
def _qkv_proj_kernel(x_ref, w_ref, b_ref, q_ref, k_ref, v_ref, *, n_hidden: int):
    H = n_hidden
    qkv = jnp.dot(x_ref[...], w_ref[...],
                  preferred_element_type=jnp.float32) + b_ref[...]        # (tm, 3H) f32
    # 1/sqrt(H) is already folded into the Q columns of the weight/bias.
    q_ref[...] = qkv[:, :H].astype(q_ref.dtype)
    k_ref[...] = qkv[:, H:2 * H].astype(k_ref.dtype)
    v_ref[...] = qkv[:, 2 * H:].astype(v_ref.dtype)


def _qkv_projection(x2d, w_qkv, b_qkv, n_hidden: int, out_dtype, *, tm: int = 256):
    bt, d = x2d.shape
    tm = min(tm, bt)
    three_h = w_qkv.shape[1]
    kernel = functools.partial(_qkv_proj_kernel, n_hidden=n_hidden)
    return pl.pallas_call(
        kernel,
        out_shape=tuple(jax.ShapeDtypeStruct((bt, n_hidden), out_dtype) for _ in range(3)),
        grid=(pl.cdiv(bt, tm),),
        in_specs=[
            pl.BlockSpec((tm, d), lambda i: (i, 0)),          # x rows
            pl.BlockSpec((d, three_h), lambda i: (0, 0)),     # fused W_qkv (one DMA)
            pl.BlockSpec((1, three_h), lambda i: (0, 0)),     # fused bias
        ],
        out_specs=tuple(pl.BlockSpec((tm, n_hidden), lambda i: (i, 0)) for _ in range(3)),
        compiler_params=pltpu.CompilerParams(dimension_semantics=("parallel",)),
    )(x2d, w_qkv, b_qkv)


# ----------------------------------------------------------------------------------- #
# Kernel 2: attention over one (tq, T) tile of one batch element                       #
# ----------------------------------------------------------------------------------- #
def _attn_kernel(*refs, tq: int, mask_mode: str, with_alpha: bool):
    it = iter(refs)
    q_ref, k_ref, v_ref = next(it), next(it), next(it)          # (tq,H), (T,H), (T,H)
    mask_ref = next(it) if mask_mode == "input" else None        # (tq,T) int8
    out_ref = next(it)                                           # (tq,H) f32
    alpha_ref = next(it) if with_alpha else None                 # (tq,T)

    # (tq, T) = q @ k^T, contracting both last dims -> no explicit transpose / XLU.
    scores = lax.dot_general(q_ref[...], k_ref[...], (((1,), (1,)), ((), ())),
                             preferred_element_type=jnp.float32)

    if mask_mode == "causal":
        # Structural mask generated in-kernel: no (B,T,T) mask DMA at all.
        i = pl.program_id(1)
        row = i * tq + lax.broadcasted_iota(jnp.int32, scores.shape, 0)
        col = lax.broadcasted_iota(jnp.int32, scores.shape, 1)
        scores = jnp.where(col <= row, scores, jnp.float32(_NEG_FILL))
    elif mask_mode == "input":
        scores = jnp.where(mask_ref[...] == 0, jnp.float32(_NEG_FILL), scores)

    m = jnp.max(scores, axis=-1, keepdims=True)
    e = jnp.exp(scores - m)
    denom = jnp.sum(e, axis=-1, keepdims=True)
    alpha = e * pl.reciprocal(denom, approx=True)                # EUP recip + VPU mul

    if with_alpha:
        alpha_ref[...] = alpha.astype(alpha_ref.dtype)           # bf16 store by default
    out_ref[...] = jnp.dot(alpha.astype(v_ref.dtype), v_ref[...],
                           preferred_element_type=jnp.float32).astype(out_ref.dtype)


def attention_head(x, w_q, w_k, w_v, b_q, b_k, b_v, attn_mask, n_hidden: int,
                   *, causal: bool = False, tq=None,
                   compute_dtype=jnp.bfloat16, alpha_dtype=jnp.bfloat16,
                   return_alpha: bool = True):
    """Single attention head, use_relative=False.

    x: (B, T, D); w_*: (D, H) pre-transposed nn.Linear weights; b_*: (H,);
    attn_mask: (B, T, T) with 0 = masked out, or None.  causal=True generates the
    causal mask in-kernel (attn_mask is then ignored).
    Returns (attn_output (B, T, H) f32, alpha (B, T, T) alpha_dtype or None).
    """
    B, T, D = x.shape
    H = n_hidden

    big_vmem = _vmem_capacity_bytes() >= 100 * 1024 * 1024       # v5e/v6e: 128 MiB
    tq = _pick_tq(T, tq, big_vmem)
    nq = T // tq
    vmem_limit = (96 if big_vmem else 48) * 1024 * 1024

    mask_mode = "causal" if causal else ("input" if attn_mask is not None else "none")

    # Fold 1/sqrt(H) into the Q columns of the fused weight/bias (host-side, O(D*H)).
    inv_scale = 1.0 / math.sqrt(H)
    w_qkv = jnp.concatenate([w_q * inv_scale, w_k, w_v], axis=1).astype(compute_dtype)
    b_qkv = jnp.concatenate([b_q * inv_scale, b_k, b_v]).reshape(1, 3 * H).astype(jnp.float32)

    # Hoisted QKV projection (its own pipelined Pallas kernel, full MXU efficiency).
    q2, k2, v2 = _qkv_projection(x.reshape(B * T, D).astype(compute_dtype),
                                 w_qkv, b_qkv, H, compute_dtype)
    q = q2.reshape(B, T, H)
    k = k2.reshape(B, T, H)
    v = v2.reshape(B, T, H)

    in_specs = [
        pl.BlockSpec((None, tq, H), lambda b, i: (b, i, 0)),     # Q tile
        pl.BlockSpec((None, T, H), lambda b, i: (b, 0, 0)),      # K (re-DMA only when b changes)
        pl.BlockSpec((None, T, H), lambda b, i: (b, 0, 0)),      # V
    ]
    inputs = [q, k, v]
    if mask_mode == "input":
        in_specs.append(pl.BlockSpec((None, tq, T), lambda b, i: (b, i, 0)))
        inputs.append(attn_mask.astype(jnp.int8))                # 4x less mask DMA

    out_shapes = [jax.ShapeDtypeStruct((B, T, H), jnp.float32)]
    out_specs = [pl.BlockSpec((None, tq, H), lambda b, i: (b, i, 0))]
    if return_alpha:
        out_shapes.append(jax.ShapeDtypeStruct((B, T, T), alpha_dtype))
        out_specs.append(pl.BlockSpec((None, tq, T), lambda b, i: (b, i, 0)))

    kernel = functools.partial(_attn_kernel, tq=tq, mask_mode=mask_mode,
                               with_alpha=return_alpha)

    results = pl.pallas_call(
        kernel,
        out_shape=tuple(out_shapes),
        grid_spec=pltpu.PrefetchScalarGridSpec(
            num_scalar_prefetch=0,
            grid=(B, nq),
            in_specs=in_specs,
            out_specs=tuple(out_specs),
        ),
        compiler_params=pltpu.CompilerParams(
            # No cross-iteration scratch -> both axes independent; megacore can split
            # over batch AND query tiles (matters for small B on v7x's 2 TCs).
            dimension_semantics=("parallel", "parallel"),
            vmem_limit_bytes=vmem_limit,
        ),
    )(*inputs)

    if return_alpha:
        out, alpha = results
    else:
        (out,) = results
        alpha = None
    return out, alpha


def _reference(x, w_q, w_k, w_v, b_q, b_k, b_v, attn_mask, n_hidden):
    q = x @ w_q + b_q
    k = x @ w_k + b_k
    v = x @ w_v + b_v
    scores = jnp.einsum("btd,bsd->bts", q, k) / math.sqrt(n_hidden)
    scores = jnp.where(attn_mask == 0, -jnp.inf, scores)
    alpha = jax.nn.softmax(scores, axis=-1)
    return jnp.einsum("bts,bsh->bth", alpha, v), alpha


if __name__ == "__main__":
    # Small shapes, but big enough to exercise query tiling (tq=64 -> 2 tiles per batch).
    B, T, D, H = 2, 128, 32, 32

    key = jax.random.PRNGKey(0)
    kx, kq, kk, kv, kbq, kbk, kbv = jax.random.split(key, 7)

    x = jax.random.normal(kx, (B, T, D), dtype=jnp.float32)

    # nn.Linear-style init (uniform(-1/sqrt(D), 1/sqrt(D))), weights pre-transposed (D, H).
    bound = 1.0 / math.sqrt(D)
    w_q = jax.random.uniform(kq, (D, H), jnp.float32, -bound, bound)
    w_k = jax.random.uniform(kk, (D, H), jnp.float32, -bound, bound)
    w_v = jax.random.uniform(kv, (D, H), jnp.float32, -bound, bound)
    b_q = jax.random.uniform(kbq, (H,), jnp.float32, -bound, bound)
    b_k = jax.random.uniform(kbk, (H,), jnp.float32, -bound, bound)
    b_v = jax.random.uniform(kbv, (H,), jnp.float32, -bound, bound)

    # causal attention mask (B, T, T): 1 = keep, 0 = mask out
    causal_tri = jnp.tril(jnp.ones((T, T), dtype=jnp.int32))
    attn_mask = jnp.broadcast_to(causal_tri, (B, T, T))

    ref_out, ref_alpha = _reference(x, w_q, w_k, w_v, b_q, b_k, b_v, attn_mask, H)

    # 1) Strict-parity config: f32 compute, f32 alpha, arbitrary mask streamed as int8.
    #    Only deviations: approx EUP reciprocal (~2^-12) and finite -1e30 mask fill.
    out, alpha = attention_head(x, w_q, w_k, w_v, b_q, b_k, b_v, attn_mask, H,
                                tq=64, compute_dtype=jnp.float32,
                                alpha_dtype=jnp.float32)
    out, alpha = jax.block_until_ready((out, alpha))
    assert jnp.allclose(out, ref_out, atol=5e-3, rtol=5e-3), "attn_output mismatch (f32)"
    assert jnp.allclose(alpha, ref_alpha, atol=5e-3, rtol=5e-3), "alpha mismatch (f32)"

    # 2) Fast default config: bf16 MXU operands + bf16 alpha stream, causal mask
    #    generated in-kernel (no (B,T,T) mask DMA at all).  Looser bf16 tolerance.
    out_fast, alpha_fast = attention_head(x, w_q, w_k, w_v, b_q, b_k, b_v, None, H,
                                          tq=64, causal=True)
    out_fast, alpha_fast = jax.block_until_ready((out_fast, alpha_fast))
    assert jnp.allclose(out_fast, ref_out, atol=4e-2, rtol=4e-2), \
        "attn_output mismatch (bf16)"
    assert jnp.allclose(alpha_fast.astype(jnp.float32), ref_alpha, atol=4e-2, rtol=4e-2), \
        "alpha mismatch (bf16)"

    print("KERNEL_OK")
</pallas_src>

<mosaic_0001>
module attributes {stable_mosaic.version = 11 : i64} {
  func.func @_qkv_proj_kernel(%arg0: i32, %arg1: memref<256x32xf32, #tpu.memory_space<vmem>>, %arg2: memref<32x96xf32, #tpu.memory_space<vmem>>, %arg3: memref<1x96xf32, #tpu.memory_space<vmem>>, %arg4: memref<256x32xf32, #tpu.memory_space<vmem>>, %arg5: memref<256x32xf32, #tpu.memory_space<vmem>>, %arg6: memref<256x32xf32, #tpu.memory_space<vmem>>) attributes {dimension_semantics = [#tpu.dimension_semantics<parallel>], iteration_bounds = array<i64: 1>, scalar_prefetch = 0 : i64, scratch_operands = 0 : i64, tpu.core_type = #tpu.core_type<tc>, window_params = [{transform_indices = @transform_0, window_bounds = array<i64: 256, 32>}, {pipeline_mode = #tpu.pipeline_mode<synchronous>, transform_indices = @transform_1, window_bounds = array<i64: 32, 96>}, {pipeline_mode = #tpu.pipeline_mode<synchronous>, transform_indices = @transform_2, window_bounds = array<i64: 1, 96>}, {transform_indices = @transform_3, window_bounds = array<i64: 256, 32>}, {transform_indices = @transform_4, window_bounds = array<i64: 256, 32>}, {transform_indices = @transform_5, window_bounds = array<i64: 256, 32>}]} {
    %c0 = arith.constant 0 : index
    %c0_0 = arith.constant 0 : index
    %0 = vector.load %arg1[%c0, %c0_0] : memref<256x32xf32, #tpu.memory_space<vmem>>, vector<256x32xf32>
    %c0_1 = arith.constant 0 : index
    %c0_2 = arith.constant 0 : index
    %1 = vector.load %arg2[%c0_1, %c0_2] : memref<32x96xf32, #tpu.memory_space<vmem>>, vector<32x96xf32>
    %cst = arith.constant dense<0.000000e+00> : vector<256x96xf32>
    %2 = tpu.matmul %0, %1, %cst {dimension_numbers = #tpu.dot_dimension_numbers<[1], [0], [0], [1], [0, 0, 1, 1], [], []>} : vector<256x32xf32>, vector<32x96xf32>, vector<256x96xf32> -> vector<256x96xf32>
    %c0_3 = arith.constant 0 : index
    %c0_4 = arith.constant 0 : index
    %3 = vector.load %arg3[%c0_3, %c0_4] : memref<1x96xf32, #tpu.memory_space<vmem>>, vector<1x96xf32>
    %4 = vector.broadcast %3 : vector<1x96xf32> to vector<256x96xf32>
    %5 = arith.addf %2, %4 : vector<256x96xf32>
    %6 = vector.extract_strided_slice %5 {offsets = [0, 0], sizes = [256, 32], strides = [1, 1]} : vector<256x96xf32> to vector<256x32xf32>
    %c0_5 = arith.constant 0 : index
    %c0_6 = arith.constant 0 : index
    %7 = vector.load %arg4[%c0_5, %c0_6] : memref<256x32xf32, #tpu.memory_space<vmem>>, vector<256x32xf32>
    tpu.vector_store %arg4[%c0_5, %c0_6], %6 {strides = array<i32>} : memref<256x32xf32, #tpu.memory_space<vmem>>, vector<256x32xf32>,
    %8 = vector.extract_strided_slice %5 {offsets = [0, 32], sizes = [256, 32], strides = [1, 1]} : vector<256x96xf32> to vector<256x32xf32>
    %c0_7 = arith.constant 0 : index
    %c0_8 = arith.constant 0 : index
    %9 = vector.load %arg5[%c0_7, %c0_8] : memref<256x32xf32, #tpu.memory_space<vmem>>, vector<256x32xf32>
    tpu.vector_store %arg5[%c0_7, %c0_8], %8 {strides = array<i32>} : memref<256x32xf32, #tpu.memory_space<vmem>>, vector<256x32xf32>,
    %10 = vector.extract_strided_slice %5 {offsets = [0, 64], sizes = [256, 32], strides = [1, 1]} : vector<256x96xf32> to vector<256x32xf32>
    %c0_9 = arith.constant 0 : index
    %c0_10 = arith.constant 0 : index
    %11 = vector.load %arg6[%c0_9, %c0_10] : memref<256x32xf32, #tpu.memory_space<vmem>>, vector<256x32xf32>
    tpu.vector_store %arg6[%c0_9, %c0_10], %10 {strides = array<i32>} : memref<256x32xf32, #tpu.memory_space<vmem>>, vector<256x32xf32>,
    return
  }
  func.func @transform_0(%arg0: i32) -> (i32, i32) {
    %c0_i32 = arith.constant 0 : i32
    %c0_i32_0 = arith.constant 0 : i32
    return %arg0, %c0_i32 : i32, i32
  }
  func.func @transform_1(%arg0: i32) -> (i32, i32) {
    %c0_i32 = arith.constant 0 : i32
    %c0_i32_0 = arith.constant 0 : i32
    %c0_i32_1 = arith.constant 0 : i32
    return %c0_i32, %c0_i32_0 : i32, i32
  }
  func.func @transform_2(%arg0: i32) -> (i32, i32) {
    %c0_i32 = arith.constant 0 : i32
    %c0_i32_0 = arith.constant 0 : i32
    %c0_i32_1 = arith.constant 0 : i32
    return %c0_i32, %c0_i32_0 : i32, i32
  }
  func.func @transform_3(%arg0: i32) -> (i32, i32) {
    %c0_i32 = arith.constant 0 : i32
    %c0_i32_0 = arith.constant 0 : i32
    return %arg0, %c0_i32 : i32, i32
  }
  func.func @transform_4(%arg0: i32) -> (i32, i32) {
    %c0_i32 = arith.constant 0 : i32
    %c0_i32_0 = arith.constant 0 : i32
    return %arg0, %c0_i32 : i32, i32
  }
  func.func @transform_5(%arg0: i32) -> (i32, i32) {
    %c0_i32 = arith.constant 0 : i32
    %c0_i32_0 = arith.constant 0 : i32
    return %arg0, %c0_i32 : i32, i32
  }
}

</mosaic_0001>

<llo_original>
// kernel: tpu_custom_call.1
$region0: #{tpu_custom_call.1}
  #allocation0 [shape = 'u32[]', space=smem, size = 0x4, offset = 0x4, fixed_abs, tag = 'smem constant byte address 0x4 - core index']
  #allocation1 [shape = 'u32[144,128]{1,0:T(1,128)}', space=vmem, size = 0x12000, scoped, tag = 'internal scratch']
  %s0 = inlined_call_operand.vmem [shape: f32[256,32], index: 0, kind: input, shape index: {}]
  %s1 = inlined_call_operand.vmem [shape: f32[32,96], index: 1, kind: input, shape index: {}]
  %s2 = inlined_call_operand.vmem [shape: f32[1,96], index: 2, kind: input, shape index: {}]
  %s3 = inlined_call_operand.vmem [shape: f32[256,32], index: 3, kind: output, shape index: {0}]
  %s4 = inlined_call_operand.vmem [shape: f32[256,32], index: 4, kind: output, shape index: {1}]
  %s5 = inlined_call_operand.vmem [shape: f32[256,32], index: 5, kind: output, shape index: {2}]
  %6 = xla_tuple %s3, %s4, %s5
  %s7 = sld [smem:[#allocation0]]
  $region38: #{tpu_custom_call.1} parent=0
    _
  %s9 = ssub.s32 1, %s7
  %s10 = scalar_select 0, %s9, %s7
  // Predicated region
  $region2: #{tpu_custom_call.1} parent=0 // pred_check
    _
  $region3: #{tpu_custom_call.1} parent=0 // pred_check_branch
    %12 = sbr.rel (0) target = $region5
  $region4: #{tpu_custom_call.1} parent=0 // pred_region
    _
  $region5: #{tpu_custom_call.1} parent=0 // pred_fallthru
    _
  // Predicated region
  $region6: #{tpu_custom_call.1} parent=0 // pred_check
    _
  $region7: #{tpu_custom_call.1} parent=0 // pred_check_branch
    %14 = sbr.rel (0) target = $region9
  $region8: #{tpu_custom_call.1} parent=0 // pred_region
    _
  $region9: #{tpu_custom_call.1} parent=0 // pred_fallthru
    _
  // Predicated region
  $region10: #{tpu_custom_call.1} parent=0 // pred_check
    _
  $region11: #{tpu_custom_call.1} parent=0 // pred_check_branch
    %16 = sbr.rel (0) target = $region13
  $region12: #{tpu_custom_call.1} parent=0 // pred_region
    _
  $region13: #{tpu_custom_call.1} parent=0 // pred_fallthru
    _
  %v17 = vld [vmem:[%s0] sm:$0xff]
  %v18 = vld [vmem:[%s0 + $0x8] sm:$0xff]
  %v19 = vld [vmem:[%s0 + $0x10] sm:$0xff]
  %v20 = vld [vmem:[%s0 + $0x18] sm:$0xff]
  %v21 = vld [vmem:[%s0 + $0x20] sm:$0xff]
  %v22 = vld [vmem:[%s0 + $0x28] sm:$0xff]
  %v23 = vld [vmem:[%s0 + $0x30] sm:$0xff]
  %v24 = vld [vmem:[%s0 + $0x38] sm:$0xff]
  %v25 = vld [vmem:[%s0 + $0x40] sm:$0xff]
  %v26 = vld [vmem:[%s0 + $0x48] sm:$0xff]
  %v27 = vld [vmem:[%s0 + $0x50] sm:$0xff]
  %v28 = vld [vmem:[%s0 + $0x58] sm:$0xff]
  %v29 = vld [vmem:[%s0 + $0x60] sm:$0xff]
  %v30 = vld [vmem:[%s0 + $0x68] sm:$0xff]
  %v31 = vld [vmem:[%s0 + $0x70] sm:$0xff]
  %v32 = vld [vmem:[%s0 + $0x78] sm:$0xff]
  %v33 = vld [vmem:[%s0 + $0x80] sm:$0xff]
  %v34 = vld [vmem:[%s0 + $0x88] sm:$0xff]
  %v35 = vld [vmem:[%s0 + $0x90] sm:$0xff]
  %v36 = vld [vmem:[%s0 + $0x98] sm:$0xff]
  %v37 = vld [vmem:[%s0 + $0xa0] sm:$0xff]
  %v38 = vld [vmem:[%s0 + $0xa8] sm:$0xff]
  %v39 = vld [vmem:[%s0 + $0xb0] sm:$0xff]
  %v40 = vld [vmem:[%s0 + $0xb8] sm:$0xff]
  %v41 = vld [vmem:[%s0 + $0xc0] sm:$0xff]
  %v42 = vld [vmem:[%s0 + $0xc8] sm:$0xff]
  %v43 = vld [vmem:[%s0 + $0xd0] sm:$0xff]
  %v44 = vld [vmem:[%s0 + $0xd8] sm:$0xff]
  %v45 = vld [vmem:[%s0 + $0xe0] sm:$0xff]
  %v46 = vld [vmem:[%s0 + $0xe8] sm:$0xff]
  %v47 = vld [vmem:[%s0 + $0xf0] sm:$0xff]
  %v48 = vld [vmem:[%s0 + $0xf8] sm:$0xff]
  %v49 = vld [vmem:[%s1] sm:$0xff]
  %v50 = vld [vmem:[%s1 + $0x8] sm:$0xff]
  %v51 = vld [vmem:[%s1 + $0x10] sm:$0xff]
  %v52 = vld [vmem:[%s1 + $0x18] sm:$0xff]
  %v53 = vld [vmem:[%s2] sm:$0x1]
  %v55 = vlaneseq
  %v56 = vshrl.u32 %v55, 7
  %v57 = vsub.s32 0, %v56
  %v58 = vrot.slane %v53, %v57
  %vm60 = vcmask 261120
  %v62 = vsel %vm60, %v17, 0
  %v65 = vsel %vm60, %v18, 0
  %v68 = vsel %vm60, %v19, 0
  %v71 = vsel %vm60, %v20, 0
  %v74 = vsel %vm60, %v21, 0
  %v77 = vsel %vm60, %v22, 0
  %v80 = vsel %vm60, %v23, 0
  %v83 = vsel %vm60, %v24, 0
  %v86 = vsel %vm60, %v25, 0
  %v89 = vsel %vm60, %v26, 0
  %v92 = vsel %vm60, %v27, 0
  %v95 = vsel %vm60, %v28, 0
  %v98 = vsel %vm60, %v29, 0
  %v101 = vsel %vm60, %v30, 0
  %v104 = vsel %vm60, %v31, 0
  %v107 = vsel %vm60, %v32, 0
  %v110 = vsel %vm60, %v33, 0
  %v113 = vsel %vm60, %v34, 0
  %v116 = vsel %vm60, %v35, 0
  %v119 = vsel %vm60, %v36, 0
  %v122 = vsel %vm60, %v37, 0
  %v125 = vsel %vm60, %v38, 0
  %v128 = vsel %vm60, %v39, 0
  %v131 = vsel %vm60, %v40, 0
  %v134 = vsel %vm60, %v41, 0
  %v137 = vsel %vm60, %v42, 0
  %v140 = vsel %vm60, %v43, 0
  %v143 = vsel %vm60, %v44, 0
  %v146 = vsel %vm60, %v45, 0
  %v149 = vsel %vm60, %v46, 0
  %v152 = vsel %vm60, %v47, 0
  %v155 = vsel %vm60, %v48, 0
  %157 = vmatprep.subr.mxu0 0.0
  %158 = vmatpush1.msra.mxu0 0.0
  %159 = vmatprep.subr.mxu0 0.0
  %160 = vmatpush1.msra.mxu0 0.0
  %161 = vmatprep.subr.mxu0 0.0
  %162 = vmatpush1.msra.mxu0 0.0
  %163 = vmatprep.subr.mxu0 0.0
  %164 = vmatpush1.msra.mxu0 0.0
  %165 = vmatprep.subr.mxu0 0.0
  %166 = vmatpush1.msra.mxu0 0.0
  %167 = vmatprep.subr.mxu0 0.0
  %168 = vmatpush1.msra.mxu0 0.0
  %169 = vmatprep.subr.mxu0 0.0
  %170 = vmatpush1.msra.mxu0 0.0
  %171 = vmatprep.subr.mxu0 0.0
  %172 = vmatpush1.msra.mxu0 0.0
  %173 = vmatprep.subr.mxu0 0.0
  %174 = vmatpush1.msra.mxu0 0.0
  %175 = vmatprep.subr.mxu0 0.0
  %176 = vmatpush1.msra.mxu0 0.0
  %177 = vmatprep.subr.mxu0 0.0
  %178 = vmatpush1.msra.mxu0 0.0
  %179 = vmatprep.subr.mxu0 0.0
  %180 = vmatpush1.msra.mxu0 0.0
  %181 = vmatprep.subr.mxu0 0.0
  %182 = vmatpush1.msra.mxu0 %v52
  %183 = vmatprep.subr.mxu0 0.0
  %184 = vmatpush1.msra.mxu0 %v51
  %185 = vmatprep.subr.mxu0 0.0
  %186 = vmatpush1.msra.mxu0 %v50
  %187 = vmatprep.subr.mxu0 0.0
  %188 = vmatpush1.msra.mxu0 %v49
  %189 = vmatprep.subr.mxu0 0.0
  %190 = vmatpush2.msra.mxu0 0.0
  %191 = vmatprep.subr.mxu0 0.0
  %192 = vmatpush2.msra.mxu0 0.0
  %193 = vmatprep.subr.mxu0 0.0
  %194 = vmatpush2.msra.mxu0 0.0
  %195 = vmatprep.subr.mxu0 0.0
  %196 = vmatpush2.msra.mxu0 0.0
  %197 = vmatprep.subr.mxu0 0.0
  %198 = vmatpush2.msra.mxu0 0.0
  %199 = vmatprep.subr.mxu0 0.0
  %200 = vmatpush2.msra.mxu0 0.0
  %201 = vmatprep.subr.mxu0 0.0
  %202 = vmatpush2.msra.mxu0 0.0
  %203 = vmatprep.subr.mxu0 0.0
  %204 = vmatpush2.msra.mxu0 0.0
  %205 = vmatprep.subr.mxu0 0.0
  %206 = vmatpush2.msra.mxu0 0.0
  %207 = vmatprep.subr.mxu0 0.0
  %208 = vmatpush2.msra.mxu0 0.0
  %209 = vmatprep.subr.mxu0 0.0
  %210 = vmatpush2.msra.mxu0 0.0
  %211 = vmatprep.subr.mxu0 0.0
  %212 = vmatpush2.msra.mxu0 0.0
  %213 = vmatprep.subr.mxu0 0.0
  %214 = vmatpush2.msra.mxu0 0.0
  %215 = vmatprep.subr.mxu0 0.0
  %216 = vmatpush2.msra.mxu0 0.0
  %217 = vmatprep.subr.mxu0 0.0
  %218 = vmatpush2.msra.mxu0 0.0
  %219 = vmatprep.subr.mxu0 0.0
  %220 = vmatpush2.msra.mxu0 0.0
  %221 = vmatprep.mubr.f32.mxu0 0.0
  %222 = vmatmul.mubr.f32.gmra.mxu0 %v62
  %v223 = vpop.f32.mrf.mxu0
  %v224 = vadd.f32 %v58, %v223
  %v225 = vpop.f32.mrf.mxu0
  %226 = vmatprep.mubr.f32.mxu0 0.0
  %227 = vmatmul.mubr.f32.gmra.mxu0 %v65
  %v228 = vpop.f32.mrf.mxu0
  %v229 = vadd.f32 %v58, %v228
  %v230 = vpop.f32.mrf.mxu0
  %231 = vmatprep.mubr.f32.mxu0 0.0
  %232 = vmatmul.mubr.f32.gmra.mxu0 %v68
  %v233 = vpop.f32.mrf.mxu0
  %v234 = vadd.f32 %v58, %v233
  %v235 = vpop.f32.mrf.mxu0
  %236 = vmatprep.mubr.f32.mxu0 0.0
  %237 = vmatmul.mubr.f32.gmra.mxu0 %v71
  %v238 = vpop.f32.mrf.mxu0
  %v239 = vadd.f32 %v58, %v238
  %v240 = vpop.f32.mrf.mxu0
  %241 = vmatprep.mubr.f32.mxu0 0.0
  %242 = vmatmul.mubr.f32.gmra.mxu0 %v74
  %v243 = vpop.f32.mrf.mxu0
  %v244 = vadd.f32 %v58, %v243
  %v245 = vpop.f32.mrf.mxu0
  %246 = vmatprep.mubr.f32.mxu0 0.0
  %247 = vmatmul.mubr.f32.gmra.mxu0 %v77
  %v248 = vpop.f32.mrf.mxu0
  %v249 = vadd.f32 %v58, %v248
  %v250 = vpop.f32.mrf.mxu0
  %251 = vmatprep.mubr.f32.mxu0 0.0
  %252 = vmatmul.mubr.f32.gmra.mxu0 %v80
  %v253 = vpop.f32.mrf.mxu0
  %v254 = vadd.f32 %v58, %v253
  %v255 = vpop.f32.mrf.mxu0
  %256 = vmatprep.mubr.f32.mxu0 0.0
  %257 = vmatmul.mubr.f32.gmra.mxu0 %v83
  %v258 = vpop.f32.mrf.mxu0
  %v259 = vadd.f32 %v58, %v258
  %v260 = vpop.f32.mrf.mxu0
  %261 = vmatprep.mubr.f32.mxu0 0.0
  %262 = vmatmul.mubr.f32.gmra.mxu0 %v86
  %v263 = vpop.f32.mrf.mxu0
  %v264 = vadd.f32 %v58, %v263
  %v265 = vpop.f32.mrf.mxu0
  %266 = vmatprep.mubr.f32.mxu0 0.0
  %267 = vmatmul.mubr.f32.gmra.mxu0 %v89
  %v268 = vpop.f32.mrf.mxu0
  %v269 = vadd.f32 %v58, %v268
  %v270 = vpop.f32.mrf.mxu0
  %271 = vmatprep.mubr.f32.mxu0 0.0
  %272 = vmatmul.mubr.f32.gmra.mxu0 %v92
  %v273 = vpop.f32.mrf.mxu0
  %v274 = vadd.f32 %v58, %v273
  %v275 = vpop.f32.mrf.mxu0
  %276 = vmatprep.mubr.f32.mxu0 0.0
  %277 = vmatmul.mubr.f32.gmra.mxu0 %v95
  %v278 = vpop.f32.mrf.mxu0
  %v279 = vadd.f32 %v58, %v278
  %v280 = vpop.f32.mrf.mxu0
  %281 = vmatprep.mubr.f32.mxu0 0.0
  %282 = vmatmul.mubr.f32.gmra.mxu0 %v98
  %v283 = vpop.f32.mrf.mxu0
  %v284 = vadd.f32 %v58, %v283
  %v285 = vpop.f32.mrf.mxu0
  %286 = vmatprep.mubr.f32.mxu0 0.0
  %287 = vmatmul.mubr.f32.gmra.mxu0 %v101
  %v288 = vpop.f32.mrf.mxu0
  %v289 = vadd.f32 %v58, %v288
  %v290 = vpop.f32.mrf.mxu0
  %291 = vmatprep.mubr.f32.mxu0 0.0
  %292 = vmatmul.mubr.f32.gmra.mxu0 %v104
  %v293 = vpop.f32.mrf.mxu0
  %v294 = vadd.f32 %v58, %v293
  %v295 = vpop.f32.mrf.mxu0
  %296 = vmatprep.mubr.f32.mxu0 0.0
  %297 = vmatmul.mubr.f32.gmra.mxu0 %v107
  %v298 = vpop.f32.mrf.mxu0
  %v299 = vadd.f32 %v58, %v298
  %v300 = vpop.f32.mrf.mxu0
  %301 = vmatprep.mubr.f32.mxu0 0.0
  %302 = vmatmul.mubr.f32.gmra.mxu0 %v110
  %v303 = vpop.f32.mrf.mxu0
  %v304 = vadd.f32 %v58, %v303
  %v305 = vpop.f32.mrf.mxu0
  %306 = vmatprep.mubr.f32.mxu0 0.0
  %307 = vmatmul.mubr.f32.gmra.mxu0 %v113
  %v308 = vpop.f32.mrf.mxu0
  %v309 = vadd.f32 %v58, %v308
  %v310 = vpop.f32.mrf.mxu0
  %311 = vmatprep.mubr.f32.mxu0 0.0
  %312 = vmatmul.mubr.f32.gmra.mxu0 %v116
  %v313 = vpop.f32.mrf.mxu0
  %v314 = vadd.f32 %v58, %v313
  %v315 = vpop.f32.mrf.mxu0
  %316 = vmatprep.mubr.f32.mxu0 0.0
  %317 = vmatmul.mubr.f32.gmra.mxu0 %v119
  %v318 = vpop.f32.mrf.mxu0
  %v319 = vadd.f32 %v58, %v318
  %v320 = vpop.f32.mrf.mxu0
  %321 = vmatprep.mubr.f32.mxu0 0.0
  %322 = vmatmul.mubr.f32.gmra.mxu0 %v122
  %v323 = vpop.f32.mrf.mxu0
  %v324 = vadd.f32 %v58, %v323
  %v325 = vpop.f32.mrf.mxu0
  %326 = vmatprep.mubr.f32.mxu0 0.0
  %327 = vmatmul.mubr.f32.gmra.mxu0 %v125
  %v328 = vpop.f32.mrf.mxu0
  %v329 = vadd.f32 %v58, %v328
  %v330 = vpop.f32.mrf.mxu0
  %331 = vmatprep.mubr.f32.mxu0 0.0
  %332 = vmatmul.mubr.f32.gmra.mxu0 %v128
  %v333 = vpop.f32.mrf.mxu0
  %v334 = vadd.f32 %v58, %v333
  %v335 = vpop.f32.mrf.mxu0
  %336 = vmatprep.mubr.f32.mxu0 0.0
  %337 = vmatmul.mubr.f32.gmra.mxu0 %v131
  %v338 = vpop.f32.mrf.mxu0
  %v339 = vadd.f32 %v58, %v338
  %v340 = vpop.f32.mrf.mxu0
  %341 = vmatprep.mubr.f32.mxu0 0.0
  %342 = vmatmul.mubr.f32.gmra.mxu0 %v134
  %v343 = vpop.f32.mrf.mxu0
  %v344 = vadd.f32 %v58, %v343
  %v345 = vpop.f32.mrf.mxu0
  %346 = vmatprep.mubr.f32.mxu0 0.0
  %347 = vmatmul.mubr.f32.gmra.mxu0 %v137
  %v348 = vpop.f32.mrf.mxu0
  %v349 = vadd.f32 %v58, %v348
  %v350 = vpop.f32.mrf.mxu0
  %351 = vmatprep.mubr.f32.mxu0 0.0
  %352 = vmatmul.mubr.f32.gmra.mxu0 %v140
  %v353 = vpop.f32.mrf.mxu0
  %v354 = vadd.f32 %v58, %v353
  %v355 = vpop.f32.mrf.mxu0
  %356 = vmatprep.mubr.f32.mxu0 0.0
  %357 = vmatmul.mubr.f32.gmra.mxu0 %v143
  %v358 = vpop.f32.mrf.mxu0
  %v359 = vadd.f32 %v58, %v358
  %v360 = vpop.f32.mrf.mxu0
  %361 = vmatprep.mubr.f32.mxu0 0.0
  %362 = vmatmul.mubr.f32.gmra.mxu0 %v146
  %v363 = vpop.f32.mrf.mxu0
  %v364 = vadd.f32 %v58, %v363
  %v365 = vpop.f32.mrf.mxu0
  %366 = vmatprep.mubr.f32.mxu0 0.0
  %367 = vmatmul.mubr.f32.gmra.mxu0 %v149
  %v368 = vpop.f32.mrf.mxu0
  %v369 = vadd.f32 %v58, %v368
  %v370 = vpop.f32.mrf.mxu0
  %371 = vmatprep.mubr.f32.mxu0 0.0
  %372 = vmatmul.mubr.f32.gmra.mxu0 %v152
  %v373 = vpop.f32.mrf.mxu0
  %v374 = vadd.f32 %v58, %v373
  %v375 = vpop.f32.mrf.mxu0
  %376 = vmatprep.mubr.f32.mxu0 0.0
  %377 = vmatmul.mubr.f32.gmra.mxu0 %v155
  %v378 = vpop.f32.mrf.mxu0
  %v379 = vadd.f32 %v58, %v378
  %v380 = vpop.f32.mrf.mxu0
  %381 = vdwg.mxu0
  %382 = vst.msk [vmem:[%s3] sm:$0xff] %vm60, %v224
  %383 = vst.msk [vmem:[%s3 + $0x8] sm:$0xff] %vm60, %v229
  %384 = vst.msk [vmem:[%s3 + $0x10] sm:$0xff] %vm60, %v234
  %385 = vst.msk [vmem:[%s3 + $0x18] sm:$0xff] %vm60, %v239
  %386 = vst.msk [vmem:[%s3 + $0x20] sm:$0xff] %vm60, %v244
  %387 = vst.msk [vmem:[%s3 + $0x28] sm:$0xff] %vm60, %v249
  %388 = vst.msk [vmem:[%s3 + $0x30] sm:$0xff] %vm60, %v254
  %389 = vst.msk [vmem:[%s3 + $0x38] sm:$0xff] %vm60, %v259
  %390 = vst.msk [vmem:[%s3 + $0x40] sm:$0xff] %vm60, %v264
  %391 = vst.msk [vmem:[%s3 + $0x48] sm:$0xff] %vm60, %v269
  %392 = vst.msk [vmem:[%s3 + $0x50] sm:$0xff] %vm60, %v274
  %393 = vst.msk [vmem:[%s3 + $0x58] sm:$0xff] %vm60, %v279
  %394 = vst.msk [vmem:[%s3 + $0x60] sm:$0xff] %vm60, %v284
  %395 = vst.msk [vmem:[%s3 + $0x68] sm:$0xff] %vm60, %v289
  %396 = vst.msk [vmem:[%s3 + $0x70] sm:$0xff] %vm60, %v294
  %397 = vst.msk [vmem:[%s3 + $0x78] sm:$0xff] %vm60, %v299
  %398 = vst.msk [vmem:[%s3 + $0x80] sm:$0xff] %vm60, %v304
  %399 = vst.msk [vmem:[%s3 + $0x88] sm:$0xff] %vm60, %v309
  %400 = vst.msk [vmem:[%s3 + $0x90] sm:$0xff] %vm60, %v314
  %401 = vst.msk [vmem:[%s3 + $0x98] sm:$0xff] %vm60, %v319
  %402 = vst.msk [vmem:[%s3 + $0xa0] sm:$0xff] %vm60, %v324
  %403 = vst.msk [vmem:[%s3 + $0xa8] sm:$0xff] %vm60, %v329
  %404 = vst.msk [vmem:[%s3 + $0xb0] sm:$0xff] %vm60, %v334
  %405 = vst.msk [vmem:[%s3 + $0xb8] sm:$0xff] %vm60, %v339
  %406 = vst.msk [vmem:[%s3 + $0xc0] sm:$0xff] %vm60, %v344
  %407 = vst.msk [vmem:[%s3 + $0xc8] sm:$0xff] %vm60, %v349
  %408 = vst.msk [vmem:[%s3 + $0xd0] sm:$0xff] %vm60, %v354
  %409 = vst.msk [vmem:[%s3 + $0xd8] sm:$0xff] %vm60, %v359
  %410 = vst.msk [vmem:[%s3 + $0xe0] sm:$0xff] %vm60, %v364
  %411 = vst.msk [vmem:[%s3 + $0xe8] sm:$0xff] %vm60, %v369
  %412 = vst.msk [vmem:[%s3 + $0xf0] sm:$0xff] %vm60, %v374
  %413 = vst.msk [vmem:[%s3 + $0xf8] sm:$0xff] %vm60, %v379
  %446 = vrot.lane.b32.xlu0 %v224, 96
  %v447 = vpop.permute.xlu0 %446
  %448 = vrot.lane.b32.xlu0 %v229, 96
  %v449 = vpop.permute.xlu0 %448
  %450 = vrot.lane.b32.xlu0 %v234, 96
  %v451 = vpop.permute.xlu0 %450
  %452 = vrot.lane.b32.xlu0 %v239, 96
  %v453 = vpop.permute.xlu0 %452
  %454 = vrot.lane.b32.xlu0 %v244, 96
  %v455 = vpop.permute.xlu0 %454
  %456 = vrot.lane.b32.xlu0 %v249, 96
  %v457 = vpop.permute.xlu0 %456
  %458 = vrot.lane.b32.xlu0 %v254, 96
  %v459 = vpop.permute.xlu0 %458
  %460 = vrot.lane.b32.xlu0 %v259, 96
  %v461 = vpop.permute.xlu0 %460
  %462 = vrot.lane.b32.xlu0 %v264, 96
  %v463 = vpop.permute.xlu0 %462
  %464 = vrot.lane.b32.xlu0 %v269, 96
  %v465 = vpop.permute.xlu0 %464
  %466 = vrot.lane.b32.xlu0 %v274, 96
  %v467 = vpop.permute.xlu0 %466
  %468 = vrot.lane.b32.xlu0 %v279, 96
  %v469 = vpop.permute.xlu0 %468
  %470 = vrot.lane.b32.xlu0 %v284, 96
  %v471 = vpop.permute.xlu0 %470
  %472 = vrot.lane.b32.xlu0 %v289, 96
  %v473 = vpop.permute.xlu0 %472
  %474 = vrot.lane.b32.xlu0 %v294, 96
  %v475 = vpop.permute.xlu0 %474
  %476 = vrot.lane.b32.xlu0 %v299, 96
  %v477 = vpop.permute.xlu0 %476
  %478 = vrot.lane.b32.xlu0 %v304, 96
  %v479 = vpop.permute.xlu0 %478
  %480 = vrot.lane.b32.xlu0 %v309, 96
  %v481 = vpop.permute.xlu0 %480
  %482 = vrot.lane.b32.xlu0 %v314, 96
  %v483 = vpop.permute.xlu0 %482
  %484 = vrot.lane.b32.xlu0 %v319, 96
  %v485 = vpop.permute.xlu0 %484
  %486 = vrot.lane.b32.xlu0 %v324, 96
  %v487 = vpop.permute.xlu0 %486
  %488 = vrot.lane.b32.xlu0 %v329, 96
  %v489 = vpop.permute.xlu0 %488
  %490 = vrot.lane.b32.xlu0 %v334, 96
  %v491 = vpop.permute.xlu0 %490
  %492 = vrot.lane.b32.xlu0 %v339, 96
  %v493 = vpop.permute.xlu0 %492
  %494 = vrot.lane.b32.xlu0 %v344, 96
  %v495 = vpop.permute.xlu0 %494
  %496 = vrot.lane.b32.xlu0 %v349, 96
  %v497 = vpop.permute.xlu0 %496
  %498 = vrot.lane.b32.xlu0 %v354, 96
  %v499 = vpop.permute.xlu0 %498
  %500 = vrot.lane.b32.xlu0 %v359, 96
  %v501 = vpop.permute.xlu0 %500
  %502 = vrot.lane.b32.xlu0 %v364, 96
  %v503 = vpop.permute.xlu0 %502
  %504 = vrot.lane.b32.xlu0 %v369, 96
  %v505 = vpop.permute.xlu0 %504
  %506 = vrot.lane.b32.xlu0 %v374, 96
  %v507 = vpop.permute.xlu0 %506
  %508 = vrot.lane.b32.xlu0 %v379, 96
  %v509 = vpop.permute.xlu0 %508
  %542 = vst.msk [vmem:[%s4] sm:$0xff] %vm60, %v447
  %543 = vst.msk [vmem:[%s4 + $0x8] sm:$0xff] %vm60, %v449
  %544 = vst.msk [vmem:[%s4 + $0x10] sm:$0xff] %vm60, %v451
  %545 = vst.msk [vmem:[%s4 + $0x18] sm:$0xff] %vm60, %v453
  %546 = vst.msk [vmem:[%s4 + $0x20] sm:$0xff] %vm60, %v455
  %547 = vst.msk [vmem:[%s4 + $0x28] sm:$0xff] %vm60, %v457
  %548 = vst.msk [vmem:[%s4 + $0x30] sm:$0xff] %vm60, %v459
  %549 = vst.msk [vmem:[%s4 + $0x38] sm:$0xff] %vm60, %v461
  %550 = vst.msk [vmem:[%s4 + $0x40] sm:$0xff] %vm60, %v463
  %551 = vst.msk [vmem:[%s4 + $0x48] sm:$0xff] %vm60, %v465
  %552 = vst.msk [vmem:[%s4 + $0x50] sm:$0xff] %vm60, %v467
  %553 = vst.msk [vmem:[%s4 + $0x58] sm:$0xff] %vm60, %v469
  %554 = vst.msk [vmem:[%s4 + $0x60] sm:$0xff] %vm60, %v471
  %555 = vst.msk [vmem:[%s4 + $0x68] sm:$0xff] %vm60, %v473
  %556 = vst.msk [vmem:[%s4 + $0x70] sm:$0xff] %vm60, %v475
  %557 = vst.msk [vmem:[%s4 + $0x78] sm:$0xff] %vm60, %v477
  %558 = vst.msk [vmem:[%s4 + $0x80] sm:$0xff] %vm60, %v479
  %559 = vst.msk [vmem:[%s4 + $0x88] sm:$0xff] %vm60, %v481
  %560 = vst.msk [vmem:[%s4 + $0x90] sm:$0xff] %vm60, %v483
  %561 = vst.msk [vmem:[%s4 + $0x98] sm:$0xff] %vm60, %v485
  %562 = vst.msk [vmem:[%s4 + $0xa0] sm:$0xff] %vm60, %v487
  %563 = vst.msk [vmem:[%s4 + $0xa8] sm:$0xff] %vm60, %v489
  %564 = vst.msk [vmem:[%s4 + $0xb0] sm:$0xff] %vm60, %v491
  %565 = vst.msk [vmem:[%s4 + $0xb8] sm:$0xff] %vm60, %v493
  %566 = vst.msk [vmem:[%s4 + $0xc0] sm:$0xff] %vm60, %v495
  %567 = vst.msk [vmem:[%s4 + $0xc8] sm:$0xff] %vm60, %v497
  %568 = vst.msk [vmem:[%s4 + $0xd0] sm:$0xff] %vm60, %v499
  %569 = vst.msk [vmem:[%s4 + $0xd8] sm:$0xff] %vm60, %v501
  %570 = vst.msk [vmem:[%s4 + $0xe0] sm:$0xff] %vm60, %v503
  %571 = vst.msk [vmem:[%s4 + $0xe8] sm:$0xff] %vm60, %v505
  %572 = vst.msk [vmem:[%s4 + $0xf0] sm:$0xff] %vm60, %v507
  %573 = vst.msk [vmem:[%s4 + $0xf8] sm:$0xff] %vm60, %v509
  %574 = vrot.lane.b32.xlu0 %v224, 64
  %v575 = vpop.permute.xlu0 %574
  %576 = vrot.lane.b32.xlu0 %v229, 64
  %v577 = vpop.permute.xlu0 %576
  %578 = vrot.lane.b32.xlu0 %v234, 64
  %v579 = vpop.permute.xlu0 %578
  %580 = vrot.lane.b32.xlu0 %v239, 64
  %v581 = vpop.permute.xlu0 %580
  %582 = vrot.lane.b32.xlu0 %v244, 64
  %v583 = vpop.permute.xlu0 %582
  %584 = vrot.lane.b32.xlu0 %v249, 64
  %v585 = vpop.permute.xlu0 %584
  %586 = vrot.lane.b32.xlu0 %v254, 64
  %v587 = vpop.permute.xlu0 %586
  %588 = vrot.lane.b32.xlu0 %v259, 64
  %v589 = vpop.permute.xlu0 %588
  %590 = vrot.lane.b32.xlu0 %v264, 64
  %v591 = vpop.permute.xlu0 %590
  %592 = vrot.lane.b32.xlu0 %v269, 64
  %v593 = vpop.permute.xlu0 %592
  %594 = vrot.lane.b32.xlu0 %v274, 64
  %v595 = vpop.permute.xlu0 %594
  %596 = vrot.lane.b32.xlu0 %v279, 64
  %v597 = vpop.permute.xlu0 %596
  %598 = vrot.lane.b32.xlu0 %v284, 64
  %v599 = vpop.permute.xlu0 %598
  %600 = vrot.lane.b32.xlu0 %v289, 64
  %v601 = vpop.permute.xlu0 %600
  %602 = vrot.lane.b32.xlu0 %v294, 64
  %v603 = vpop.permute.xlu0 %602
  %604 = vrot.lane.b32.xlu0 %v299, 64
  %v605 = vpop.permute.xlu0 %604
  %606 = vrot.lane.b32.xlu0 %v304, 64
  %v607 = vpop.permute.xlu0 %606
  %608 = vrot.lane.b32.xlu0 %v309, 64
  %v609 = vpop.permute.xlu0 %608
  %610 = vrot.lane.b32.xlu0 %v314, 64
  %v611 = vpop.permute.xlu0 %610
  %612 = vrot.lane.b32.xlu0 %v319, 64
  %v613 = vpop.permute.xlu0 %612
  %614 = vrot.lane.b32.xlu0 %v324, 64
  %v615 = vpop.permute.xlu0 %614
  %616 = vrot.lane.b32.xlu0 %v329, 64
  %v617 = vpop.permute.xlu0 %616
  %618 = vrot.lane.b32.xlu0 %v334, 64
  %v619 = vpop.permute.xlu0 %618
  %620 = vrot.lane.b32.xlu0 %v339, 64
  %v621 = vpop.permute.xlu0 %620
  %622 = vrot.lane.b32.xlu0 %v344, 64
  %v623 = vpop.permute.xlu0 %622
  %624 = vrot.lane.b32.xlu0 %v349, 64
  %v625 = vpop.permute.xlu0 %624
  %626 = vrot.lane.b32.xlu0 %v354, 64
  %v627 = vpop.permute.xlu0 %626
  %628 = vrot.lane.b32.xlu0 %v359, 64
  %v629 = vpop.permute.xlu0 %628
  %630 = vrot.lane.b32.xlu0 %v364, 64
  %v631 = vpop.permute.xlu0 %630
  %632 = vrot.lane.b32.xlu0 %v369, 64
  %v633 = vpop.permute.xlu0 %632
  %634 = vrot.lane.b32.xlu0 %v374, 64
  %v635 = vpop.permute.xlu0 %634
  %636 = vrot.lane.b32.xlu0 %v379, 64
  %v637 = vpop.permute.xlu0 %636
  %670 = vst.msk [vmem:[%s5] sm:$0xff] %vm60, %v575
  %671 = vst.msk [vmem:[%s5 + $0x8] sm:$0xff] %vm60, %v577
  %672 = vst.msk [vmem:[%s5 + $0x10] sm:$0xff] %vm60, %v579
  %673 = vst.msk [vmem:[%s5 + $0x18] sm:$0xff] %vm60, %v581
  %674 = vst.msk [vmem:[%s5 + $0x20] sm:$0xff] %vm60, %v583
  %675 = vst.msk [vmem:[%s5 + $0x28] sm:$0xff] %vm60, %v585
  %676 = vst.msk [vmem:[%s5 + $0x30] sm:$0xff] %vm60, %v587
  %677 = vst.msk [vmem:[%s5 + $0x38] sm:$0xff] %vm60, %v589
  %678 = vst.msk [vmem:[%s5 + $0x40] sm:$0xff] %vm60, %v591
  %679 = vst.msk [vmem:[%s5 + $0x48] sm:$0xff] %vm60, %v593
  %680 = vst.msk [vmem:[%s5 + $0x50] sm:$0xff] %vm60, %v595
  %681 = vst.msk [vmem:[%s5 + $0x58] sm:$0xff] %vm60, %v597
  %682 = vst.msk [vmem:[%s5 + $0x60] sm:$0xff] %vm60, %v599
  %683 = vst.msk [vmem:[%s5 + $0x68] sm:$0xff] %vm60, %v601
  %684 = vst.msk [vmem:[%s5 + $0x70] sm:$0xff] %vm60, %v603
  %685 = vst.msk [vmem:[%s5 + $0x78] sm:$0xff] %vm60, %v605
  %686 = vst.msk [vmem:[%s5 + $0x80] sm:$0xff] %vm60, %v607
  %687 = vst.msk [vmem:[%s5 + $0x88] sm:$0xff] %vm60, %v609
  %688 = vst.msk [vmem:[%s5 + $0x90] sm:$0xff] %vm60, %v611
  %689 = vst.msk [vmem:[%s5 + $0x98] sm:$0xff] %vm60, %v613
  %690 = vst.msk [vmem:[%s5 + $0xa0] sm:$0xff] %vm60, %v615
  %691 = vst.msk [vmem:[%s5 + $0xa8] sm:$0xff] %vm60, %v617
  %692 = vst.msk [vmem:[%s5 + $0xb0] sm:$0xff] %vm60, %v619
  %693 = vst.msk [vmem:[%s5 + $0xb8] sm:$0xff] %vm60, %v621
  %694 = vst.msk [vmem:[%s5 + $0xc0] sm:$0xff] %vm60, %v623
  %695 = vst.msk [vmem:[%s5 + $0xc8] sm:$0xff] %vm60, %v625
  %696 = vst.msk [vmem:[%s5 + $0xd0] sm:$0xff] %vm60, %v627
  %697 = vst.msk [vmem:[%s5 + $0xd8] sm:$0xff] %vm60, %v629
  %698 = vst.msk [vmem:[%s5 + $0xe0] sm:$0xff] %vm60, %v631
  %699 = vst.msk [vmem:[%s5 + $0xe8] sm:$0xff] %vm60, %v633
  %700 = vst.msk [vmem:[%s5 + $0xf0] sm:$0xff] %vm60, %v635
  %701 = vst.msk [vmem:[%s5 + $0xf8] sm:$0xff] %vm60, %v637
  // Predicated region
  $region14: #{tpu_custom_call.1} parent=0 // pred_check
    _
  $region15: #{tpu_custom_call.1} parent=0 // pred_check_branch
    %703 = sbr.rel (0) target = $region17
  $region16: #{tpu_custom_call.1} parent=0 // pred_region
    _
  $region17: #{tpu_custom_call.1} parent=0 // pred_fallthru
    _
  // Predicated region
  $region18: #{tpu_custom_call.1} parent=0 // pred_check
    _
  $region19: #{tpu_custom_call.1} parent=0 // pred_check_branch
    %705 = sbr.rel (0) target = $region21
  $region20: #{tpu_custom_call.1} parent=0 // pred_region
    _
  $region21: #{tpu_custom_call.1} parent=0 // pred_fallthru
    _
  // Predicated region
  $region22: #{tpu_custom_call.1} parent=0 // pred_check
    _
  $region23: #{tpu_custom_call.1} parent=0 // pred_check_branch
    %707 = sbr.rel (0) target = $region25
  $region24: #{tpu_custom_call.1} parent=0 // pred_region
    _
  $region25: #{tpu_custom_call.1} parent=0 // pred_fallthru
    _
  // Predicated region
  $region26: #{tpu_custom_call.1} parent=0 // pred_check
    _
  $region27: #{tpu_custom_call.1} parent=0 // pred_check_branch
    %709 = sbr.rel (0) target = $region29
  $region28: #{tpu_custom_call.1} parent=0 // pred_region
    _
  $region29: #{tpu_custom_call.1} parent=0 // pred_fallthru
    _
  // Predicated region
  $region30: #{tpu_custom_call.1} parent=0 // pred_check
    _
  $region31: #{tpu_custom_call.1} parent=0 // pred_check_branch
    %711 = sbr.rel (0) target = $region33
  $region32: #{tpu_custom_call.1} parent=0 // pred_region
    _
  $region33: #{tpu_custom_call.1} parent=0 // pred_fallthru
    _
  // Predicated region
  $region34: #{tpu_custom_call.1} parent=0 // pred_check
    _
  $region35: #{tpu_custom_call.1} parent=0 // pred_check_branch
    %713 = sbr.rel (0) target = $region37
  $region36: #{tpu_custom_call.1} parent=0 // pred_region
    _
  $region37: #{tpu_custom_call.1} parent=0 // pred_fallthru
    _

</llo_original>
